<compile_context>
chip_gen: v5e
topology: v5e:2x2
jax: 0.10.0
libtpu: 0.0.40
codegen_flags: <defaults>
</compile_context>

<pallas_src>
import numpy as np
import jax
import jax.numpy as jnp
from jax import lax
from jax.experimental import pallas as pl
from jax.experimental.pallas import tpu as pltpu

FP = 128    # padded feature width (lane multiple)
CPJ = 4     # channels per joint (rotation quaternion of a dual quaternion)


# -----------------------------------------------------------------------------
# Skeleton topology helpers.
# Convention: `parents` lists edges; the LAST edge is the virtual
# "displacement" edge with parent == -1.
# -----------------------------------------------------------------------------
def create_pooling_list(parents, add_displacement):
    n = len(parents)
    motion = list(range(n - 1))
    disp = n - 1
    groups = [motion[i:i + 2] for i in range(0, len(motion), 2)]
    if add_displacement:
        groups.append([disp])             # keep displacement as its own edge
    else:
        groups[-1] = groups[-1] + [disp]  # merge displacement at coarsest level
    fine_to_group = {}
    for gi, g in enumerate(groups):
        for e in g:
            fine_to_group[e] = gi
    new_parents = []
    for gi, g in enumerate(groups):
        p = parents[g[0]]
        if p == -1 or fine_to_group.get(p, gi) == gi:
            new_parents.append(-1)
        else:
            new_parents.append(fine_to_group[p])
    return groups, new_parents


def find_neighbor(parents, distance):
    n = len(parents)
    adj = np.eye(n, dtype=np.int32)
    for i in range(n):
        for j in range(n):
            if i != j and (parents[i] == j or parents[j] == i
                           or parents[i] == parents[j]):
                adj[i, j] = 1
    reach = np.eye(n, dtype=np.int32)
    for _ in range(distance):
        reach = ((reach @ adj) > 0).astype(np.int32)
    neighbor_list = [sorted(np.nonzero(reach[i])[0].tolist()) for i in range(n)]
    return neighbor_list, parents


# -----------------------------------------------------------------------------
# Deterministic parameter construction (mirrors Decoder.__init__).
# -----------------------------------------------------------------------------
def build_decoder(param, parents, key):
    number_layers = 3
    kernel_size = param['kernel_size_temporal_dim']
    padding = (kernel_size - 1) // 2
    factor = param['channel_factor']
    channel_size = [CPJ] + [CPJ * factor ** i for i in range(1, number_layers + 1)]

    all_parents = [list(parents)]
    pooling_lists = []
    layer_parents = list(parents)
    for l in range(number_layers):
        plist, layer_parents = create_pooling_list(
            layer_parents, add_displacement=(l != number_layers - 1))
        pooling_lists.append(plist)
        all_parents.append(layer_parents)

    primal_skel_features = channel_size[-1] * len(all_parents[-1])

    keys = jax.random.split(key, 2 + 2 * number_layers)
    w_lat = 0.1 * np.asarray(jax.random.normal(
        keys[0], (primal_skel_features, param['latent_dim']), jnp.float32))
    b_lat = 0.1 * np.asarray(jax.random.normal(
        keys[1], (primal_skel_features,), jnp.float32))

    layers = []
    for l in range(number_layers):
        lvl = number_layers - l - 1
        neighbor_list, _ = find_neighbor(all_parents[lvl],
                                         param['neighbor_distance'])
        num_joints = len(neighbor_list)
        in_pj = channel_size[number_layers - l]
        out_pj = in_pj // factor
        plist = pooling_lists[lvl]

        # SkeletonUnpool: copy each coarse edge's channels to its fine edges.
        n_fine = sum(len(g) for g in plist)
        assert n_fine == num_joints
        U = np.zeros((n_fine * in_pj, len(plist) * in_pj), np.float32)
        for i, g in enumerate(plist):
            for j in g:
                for c in range(in_pj):
                    U[j * in_pj + c, i * in_pj + c] = 1.0

        # SkeletonConv: Conv1d with neighbourhood-masked weights.  Since T == 1,
        # stride == 1 and padding == (k-1)//2, only the centre tap ever touches
        # real (non zero-padded) data, so the conv collapses exactly to a
        # masked matmul with the centre-tap weights.
        w3 = 0.1 * np.asarray(jax.random.normal(
            keys[2 + 2 * l],
            (out_pj * num_joints, in_pj * num_joints, kernel_size), jnp.float32))
        bias = 0.1 * np.asarray(jax.random.normal(
            keys[3 + 2 * l], (out_pj * num_joints,), jnp.float32))
        mask = np.zeros((out_pj * num_joints, in_pj * num_joints), np.float32)
        for i in range(num_joints):
            for j in neighbor_list[i]:
                mask[i * out_pj:(i + 1) * out_pj,
                     j * in_pj:(j + 1) * in_pj] = 1.0
        w_eff = w3[:, :, padding] * mask

        layers.append(dict(U=U, W=w_eff, b=bias,
                           relu=(l != number_layers - 1)))

    return dict(w_lat=w_lat, b_lat=b_lat, layers=layers,
                primal=primal_skel_features,
                n_motion_ch=CPJ * (len(parents) - 1))


# -----------------------------------------------------------------------------
# The fused Pallas kernel: 3 folded matmuls -> quaternion normalize -> re-norm.
# -----------------------------------------------------------------------------
def _decoder_kernel(z_ref, w0_ref, b0_ref, w1_ref, b1_ref, w2_ref, b2_ref,
                    g_ref, mean_ref, inv_std_ref, post_ref, motion_ref):
    f32 = jnp.float32
    # folded latent + layer 0 (unpool + masked conv), LeakyReLU(0.2)
    x = jnp.dot(z_ref[...], w0_ref[...], preferred_element_type=f32) + b0_ref[...]
    x = jnp.maximum(x, 0.2 * x)
    # folded layer 1, LeakyReLU(0.2)
    x = jnp.dot(x, w1_ref[...], preferred_element_type=f32) + b1_ref[...]
    x = jnp.maximum(x, 0.2 * x)
    # folded layer 2 with de-normalization baked into W/b:
    #   m = raw * std + mean  (std==1, mean==0 on displacement / pad columns)
    m = jnp.dot(x, w2_ref[...], preferred_element_type=f32) + b2_ref[...]
    post_ref[...] = m
    # per-quaternion (group-of-4) squared norm via one block-diagonal matmul
    sq = jnp.dot(m * m, g_ref[...], preferred_element_type=f32)
    qn = m * jnp.where(sq > 0, lax.rsqrt(sq), 0.0)
    motion_ref[...] = (qn - mean_ref[...]) * inv_std_ref[...]


# -----------------------------------------------------------------------------
# One-time host-side prep (folding + padding + H2D) and jitted forward.
# -----------------------------------------------------------------------------
def make_decoder_forward(params, mean_dqs, std_dqs):
    n_motion = params['n_motion_ch']
    assert n_motion % CPJ == 0, "quaternion groups must not straddle channels"
    assert n_motion + CPJ <= FP
    latent_dim = params['w_lat'].shape[1]

    # ---- fold the constant linear chain offline (7 matmuls -> 3) ----
    L0, L1, L2 = params['layers']
    A0 = L0['U'].T @ L0['W'].T                       # (primal, F0)
    Wf0 = params['w_lat'].T @ A0                     # (latent, F0)
    bf0 = params['b_lat'] @ A0 + L0['b']
    Wf1 = L1['U'].T @ L1['W'].T
    bf1 = L1['b']
    Wf2 = L2['U'].T @ L2['W'].T
    bf2 = L2['b']

    # ---- fold the de-normalization (x*std + mean) into the last matmul ----
    mean4 = np.asarray(mean_dqs, np.float32).reshape(-1, 8)[:, :CPJ].flatten()
    std4 = np.asarray(std_dqs, np.float32).reshape(-1, 8)[:, :CPJ].flatten()
    std_row = np.ones((FP,), np.float32)
    std_row[:n_motion] = std4
    mean_row = np.zeros((FP,), np.float32)
    mean_row[:n_motion] = mean4
    inv_std_row = 1.0 / std_row

    def pad2(a):
        out = np.zeros((FP, FP), np.float32)
        out[:a.shape[0], :a.shape[1]] = a
        return out

    def pad_row(v):
        out = np.zeros((1, FP), np.float32)
        out[0, :v.shape[0]] = v
        return out

    Wf2p = pad2(Wf2) * std_row[None, :]
    bf2p = pad_row(bf2) * std_row[None, :] + mean_row[None, :]

    # block-diagonal ones(4,4): per-quaternion squared-norm via one matmul
    g = np.kron(np.eye(FP // CPJ, dtype=np.float32),
                np.ones((CPJ, CPJ), np.float32))

    consts = [pad2(Wf0), pad_row(bf0), pad2(Wf1), pad_row(bf1),
              Wf2p, bf2p, g, mean_row[None, :], inv_std_row[None, :]]
    consts = [jnp.asarray(c) for c in consts]   # single H2D copy, kept on device

    @jax.jit
    def forward(latent):
        B = latent.shape[0]
        BM = 8 if B <= 8 else 128          # small batch: one 8-row tile
        nbt = -(-B // BM)
        B_pad = nbt * BM
        z = jnp.zeros((B_pad, FP), jnp.float32).at[:B, :latent_dim].set(
            latent.astype(jnp.float32))

        row_spec = pl.BlockSpec((BM, FP), lambda i: (i, 0))
        w_spec = pl.BlockSpec((FP, FP), lambda i: (0, 0))   # VMEM-resident
        b_spec = pl.BlockSpec((1, FP), lambda i: (0, 0))

        post, motion = pl.pallas_call(
            _decoder_kernel,
            out_shape=(jax.ShapeDtypeStruct((B_pad, FP), jnp.float32),
                       jax.ShapeDtypeStruct((B_pad, FP), jnp.float32)),
            grid_spec=pltpu.PrefetchScalarGridSpec(
                num_scalar_prefetch=0,
                grid=(nbt,),
                in_specs=[row_spec,
                          w_spec, b_spec,    # folded layer 0
                          w_spec, b_spec,    # folded layer 1
                          w_spec, b_spec,    # folded layer 2 (+ de-norm)
                          w_spec,            # group-of-4 reduction matrix
                          b_spec, b_spec],   # mean, inv_std
                out_specs=(row_spec, row_spec)),
            compiler_params=pltpu.CompilerParams(
                dimension_semantics=("parallel",)),
        )(z, *consts)

        motion_out = motion[:B, :n_motion, None]                # (B, 28, 1)
        displacement = post[:B, n_motion:n_motion + 3, None]    # (B, 3, 1)
        return motion_out, displacement

    return forward


# -----------------------------------------------------------------------------
# Pure-numpy reference of the same forward (T == 1), for correctness checking.
# Uses the UNFOLDED parameters to also validate the offline folding.
# -----------------------------------------------------------------------------
def reference_forward(params, latent, mean_dqs, std_dqs):
    x = np.asarray(latent, np.float64) @ params['w_lat'].T + params['b_lat']
    for layer in params['layers']:
        x = x @ layer['U'].T
        x = x @ layer['W'].T + layer['b']
        if layer['relu']:
            x = np.where(x > 0, x, 0.2 * x)
    n_motion = params['n_motion_ch']
    motion = x[:, :n_motion]
    disp = x[:, n_motion:n_motion + 3]
    mean4 = np.asarray(mean_dqs, np.float64).reshape(-1, 8)[:, :CPJ].flatten()
    std4 = np.asarray(std_dqs, np.float64).reshape(-1, 8)[:, :CPJ].flatten()
    m = motion * std4 + mean4
    q = m.reshape(m.shape[0], -1, CPJ)
    q = q / np.linalg.norm(q, axis=-1, keepdims=True)
    m = (q.reshape(m.shape[0], -1) - mean4) / std4
    return m[:, :, None], disp[:, :, None]


if __name__ == "__main__":
    param = dict(kernel_size_temporal_dim=3, channel_factor=2,
                 latent_dim=16, neighbor_distance=2)
    # 7 motion edges (small tree) + 1 trailing virtual displacement edge
    parents = [-1, 0, 1, 2, 0, 4, 5, -1]

    key = jax.random.PRNGKey(0)
    k_param, k_lat, k_mean, k_std = jax.random.split(key, 4)
    params = build_decoder(param, parents, k_param)

    B = 2
    n_dq_joints = len(parents) - 1          # 7 motion joints, 8 dq channels each
    latent = jax.random.normal(k_lat, (B, param['latent_dim']), jnp.float32)
    mean_dqs = 0.1 * jax.random.normal(k_mean, (n_dq_joints * 8,), jnp.float32)
    std_dqs = 0.5 + jax.random.uniform(k_std, (n_dq_joints * 8,), jnp.float32)

    decoder_forward = make_decoder_forward(params, np.asarray(mean_dqs),
                                           np.asarray(std_dqs))

    motion, displacement = decoder_forward(latent)
    jax.block_until_ready((motion, displacement))

    ref_motion, ref_disp = reference_forward(params, np.asarray(latent),
                                             np.asarray(mean_dqs),
                                             np.asarray(std_dqs))
    assert motion.shape == (B, params['n_motion_ch'], 1)
    assert displacement.shape == (B, 3, 1)
    np.testing.assert_allclose(np.asarray(motion), ref_motion, rtol=2e-3, atol=2e-3)
    np.testing.assert_allclose(np.asarray(displacement), ref_disp, rtol=2e-3, atol=2e-3)
    print("KERNEL_OK")
</pallas_src>

<mosaic_0001>
module attributes {stable_mosaic.version = 11 : i64} {
  func.func @_decoder_kernel(%arg0: i32, %arg1: memref<8x128xf32, #tpu.memory_space<vmem>>, %arg2: memref<128x128xf32, #tpu.memory_space<vmem>>, %arg3: memref<1x128xf32, #tpu.memory_space<vmem>>, %arg4: memref<128x128xf32, #tpu.memory_space<vmem>>, %arg5: memref<1x128xf32, #tpu.memory_space<vmem>>, %arg6: memref<128x128xf32, #tpu.memory_space<vmem>>, %arg7: memref<1x128xf32, #tpu.memory_space<vmem>>, %arg8: memref<128x128xf32, #tpu.memory_space<vmem>>, %arg9: memref<1x128xf32, #tpu.memory_space<vmem>>, %arg10: memref<1x128xf32, #tpu.memory_space<vmem>>, %arg11: memref<8x128xf32, #tpu.memory_space<vmem>>, %arg12: memref<8x128xf32, #tpu.memory_space<vmem>>) attributes {dimension_semantics = [#tpu.dimension_semantics<parallel>], iteration_bounds = array<i64: 1>, scalar_prefetch = 0 : i64, scratch_operands = 0 : i64, tpu.core_type = #tpu.core_type<tc>, window_params = [{transform_indices = @transform_0, window_bounds = array<i64: 8, 128>}, {pipeline_mode = #tpu.pipeline_mode<synchronous>, transform_indices = @transform_1, window_bounds = array<i64: 128, 128>}, {pipeline_mode = #tpu.pipeline_mode<synchronous>, transform_indices = @transform_2, window_bounds = array<i64: 1, 128>}, {pipeline_mode = #tpu.pipeline_mode<synchronous>, transform_indices = @transform_3, window_bounds = array<i64: 128, 128>}, {pipeline_mode = #tpu.pipeline_mode<synchronous>, transform_indices = @transform_4, window_bounds = array<i64: 1, 128>}, {pipeline_mode = #tpu.pipeline_mode<synchronous>, transform_indices = @transform_5, window_bounds = array<i64: 128, 128>}, {pipeline_mode = #tpu.pipeline_mode<synchronous>, transform_indices = @transform_6, window_bounds = array<i64: 1, 128>}, {pipeline_mode = #tpu.pipeline_mode<synchronous>, transform_indices = @transform_7, window_bounds = array<i64: 128, 128>}, {pipeline_mode = #tpu.pipeline_mode<synchronous>, transform_indices = @transform_8, window_bounds = array<i64: 1, 128>}, {pipeline_mode = #tpu.pipeline_mode<synchronous>, transform_indices = @transform_9, window_bounds = array<i64: 1, 128>}, {transform_indices = @transform_10, window_bounds = array<i64: 8, 128>}, {transform_indices = @transform_11, window_bounds = array<i64: 8, 128>}]} {
    %c0 = arith.constant 0 : index
    %c0_0 = arith.constant 0 : index
    %0 = vector.load %arg1[%c0, %c0_0] : memref<8x128xf32, #tpu.memory_space<vmem>>, vector<8x128xf32>
    %c0_1 = arith.constant 0 : index
    %c0_2 = arith.constant 0 : index
    %1 = vector.load %arg2[%c0_1, %c0_2] : memref<128x128xf32, #tpu.memory_space<vmem>>, vector<128x128xf32>
    %cst = arith.constant dense<0.000000e+00> : vector<8x128xf32>
    %2 = tpu.matmul %0, %1, %cst {dimension_numbers = #tpu.dot_dimension_numbers<[1], [0], [0], [1], [0, 0, 1, 1], [], []>} : vector<8x128xf32>, vector<128x128xf32>, vector<8x128xf32> -> vector<8x128xf32>
    %c0_3 = arith.constant 0 : index
    %c0_4 = arith.constant 0 : index
    %3 = vector.load %arg3[%c0_3, %c0_4] : memref<1x128xf32, #tpu.memory_space<vmem>>, vector<1x128xf32>
    %4 = vector.broadcast %3 : vector<1x128xf32> to vector<8x128xf32>
    %5 = arith.addf %2, %4 : vector<8x128xf32>
    %cst_5 = arith.constant 2.000000e-01 : f32
    %6 = vector.broadcast %cst_5 : f32 to vector<8x128xf32>
    %7 = arith.mulf %6, %5 : vector<8x128xf32>
    %8 = arith.maximumf %5, %7 : vector<8x128xf32>
    %c0_6 = arith.constant 0 : index
    %c0_7 = arith.constant 0 : index
    %9 = vector.load %arg4[%c0_6, %c0_7] : memref<128x128xf32, #tpu.memory_space<vmem>>, vector<128x128xf32>
    %cst_8 = arith.constant dense<0.000000e+00> : vector<8x128xf32>
    %10 = tpu.matmul %8, %9, %cst_8 {dimension_numbers = #tpu.dot_dimension_numbers<[1], [0], [0], [1], [0, 0, 1, 1], [], []>} : vector<8x128xf32>, vector<128x128xf32>, vector<8x128xf32> -> vector<8x128xf32>
    %c0_9 = arith.constant 0 : index
    %c0_10 = arith.constant 0 : index
    %11 = vector.load %arg5[%c0_9, %c0_10] : memref<1x128xf32, #tpu.memory_space<vmem>>, vector<1x128xf32>
    %12 = vector.broadcast %11 : vector<1x128xf32> to vector<8x128xf32>
    %13 = arith.addf %10, %12 : vector<8x128xf32>
    %cst_11 = arith.constant 2.000000e-01 : f32
    %14 = vector.broadcast %cst_11 : f32 to vector<8x128xf32>
    %15 = arith.mulf %14, %13 : vector<8x128xf32>
    %16 = arith.maximumf %13, %15 : vector<8x128xf32>
    %c0_12 = arith.constant 0 : index
    %c0_13 = arith.constant 0 : index
    %17 = vector.load %arg6[%c0_12, %c0_13] : memref<128x128xf32, #tpu.memory_space<vmem>>, vector<128x128xf32>
    %cst_14 = arith.constant dense<0.000000e+00> : vector<8x128xf32>
    %18 = tpu.matmul %16, %17, %cst_14 {dimension_numbers = #tpu.dot_dimension_numbers<[1], [0], [0], [1], [0, 0, 1, 1], [], []>} : vector<8x128xf32>, vector<128x128xf32>, vector<8x128xf32> -> vector<8x128xf32>
    %c0_15 = arith.constant 0 : index
    %c0_16 = arith.constant 0 : index
    %19 = vector.load %arg7[%c0_15, %c0_16] : memref<1x128xf32, #tpu.memory_space<vmem>>, vector<1x128xf32>
    %20 = vector.broadcast %19 : vector<1x128xf32> to vector<8x128xf32>
    %21 = arith.addf %18, %20 : vector<8x128xf32>
    %c0_17 = arith.constant 0 : index
    %c0_18 = arith.constant 0 : index
    %22 = vector.load %arg11[%c0_17, %c0_18] : memref<8x128xf32, #tpu.memory_space<vmem>>, vector<8x128xf32>
    tpu.vector_store %arg11[%c0_17, %c0_18], %21 {strides = array<i32>} : memref<8x128xf32, #tpu.memory_space<vmem>>, vector<8x128xf32>,
    %23 = arith.mulf %21, %21 : vector<8x128xf32>
    %c0_19 = arith.constant 0 : index
    %c0_20 = arith.constant 0 : index
    %24 = vector.load %arg8[%c0_19, %c0_20] : memref<128x128xf32, #tpu.memory_space<vmem>>, vector<128x128xf32>
    %cst_21 = arith.constant dense<0.000000e+00> : vector<8x128xf32>
    %25 = tpu.matmul %23, %24, %cst_21 {dimension_numbers = #tpu.dot_dimension_numbers<[1], [0], [0], [1], [0, 0, 1, 1], [], []>} : vector<8x128xf32>, vector<128x128xf32>, vector<8x128xf32> -> vector<8x128xf32>
    %cst_22 = arith.constant 0.000000e+00 : f32
    %26 = vector.broadcast %cst_22 : f32 to vector<8x128xf32>
    %27 = arith.cmpf ogt, %25, %26 : vector<8x128xf32>
    %28 = math.rsqrt %25 : vector<8x128xf32>
    %cst_23 = arith.constant 0.000000e+00 : f32
    %29 = vector.broadcast %cst_23 : f32 to vector<8x128xf32>
    %30 = arith.select %27, %28, %29 : vector<8x128xi1>, vector<8x128xf32>
    %31 = arith.mulf %21, %30 : vector<8x128xf32>
    %c0_24 = arith.constant 0 : index
    %c0_25 = arith.constant 0 : index
    %32 = vector.load %arg9[%c0_24, %c0_25] : memref<1x128xf32, #tpu.memory_space<vmem>>, vector<1x128xf32>
    %33 = vector.broadcast %32 : vector<1x128xf32> to vector<8x128xf32>
    %34 = arith.subf %31, %33 : vector<8x128xf32>
    %c0_26 = arith.constant 0 : index
    %c0_27 = arith.constant 0 : index
    %35 = vector.load %arg10[%c0_26, %c0_27] : memref<1x128xf32, #tpu.memory_space<vmem>>, vector<1x128xf32>
    %36 = vector.broadcast %35 : vector<1x128xf32> to vector<8x128xf32>
    %37 = arith.mulf %34, %36 : vector<8x128xf32>
    %c0_28 = arith.constant 0 : index
    %c0_29 = arith.constant 0 : index
    %38 = vector.load %arg12[%c0_28, %c0_29] : memref<8x128xf32, #tpu.memory_space<vmem>>, vector<8x128xf32>
    tpu.vector_store %arg12[%c0_28, %c0_29], %37 {strides = array<i32>} : memref<8x128xf32, #tpu.memory_space<vmem>>, vector<8x128xf32>,
    return
  }
  func.func @transform_0(%arg0: i32) -> (i32, i32) {
    %c0_i32 = arith.constant 0 : i32
    %c0_i32_0 = arith.constant 0 : i32
    return %arg0, %c0_i32 : i32, i32
  }
  func.func @transform_1(%arg0: i32) -> (i32, i32) {
    %c0_i32 = arith.constant 0 : i32
    %c0_i32_0 = arith.constant 0 : i32
    %c0_i32_1 = arith.constant 0 : i32
    return %c0_i32, %c0_i32_0 : i32, i32
  }
  func.func @transform_2(%arg0: i32) -> (i32, i32) {
    %c0_i32 = arith.constant 0 : i32
    %c0_i32_0 = arith.constant 0 : i32
    %c0_i32_1 = arith.constant 0 : i32
    return %c0_i32, %c0_i32_0 : i32, i32
  }
  func.func @transform_3(%arg0: i32) -> (i32, i32) {
    %c0_i32 = arith.constant 0 : i32
    %c0_i32_0 = arith.constant 0 : i32
    %c0_i32_1 = arith.constant 0 : i32
    return %c0_i32, %c0_i32_0 : i32, i32
  }
  func.func @transform_4(%arg0: i32) -> (i32, i32) {
    %c0_i32 = arith.constant 0 : i32
    %c0_i32_0 = arith.constant 0 : i32
    %c0_i32_1 = arith.constant 0 : i32
    return %c0_i32, %c0_i32_0 : i32, i32
  }
  func.func @transform_5(%arg0: i32) -> (i32, i32) {
    %c0_i32 = arith.constant 0 : i32
    %c0_i32_0 = arith.constant 0 : i32
    %c0_i32_1 = arith.constant 0 : i32
    return %c0_i32, %c0_i32_0 : i32, i32
  }
  func.func @transform_6(%arg0: i32) -> (i32, i32) {
    %c0_i32 = arith.constant 0 : i32
    %c0_i32_0 = arith.constant 0 : i32
    %c0_i32_1 = arith.constant 0 : i32
    return %c0_i32, %c0_i32_0 : i32, i32
  }
  func.func @transform_7(%arg0: i32) -> (i32, i32) {
    %c0_i32 = arith.constant 0 : i32
    %c0_i32_0 = arith.constant 0 : i32
    %c0_i32_1 = arith.constant 0 : i32
    return %c0_i32, %c0_i32_0 : i32, i32
  }
  func.func @transform_8(%arg0: i32) -> (i32, i32) {
    %c0_i32 = arith.constant 0 : i32
    %c0_i32_0 = arith.constant 0 : i32
    %c0_i32_1 = arith.constant 0 : i32
    return %c0_i32, %c0_i32_0 : i32, i32
  }
  func.func @transform_9(%arg0: i32) -> (i32, i32) {
    %c0_i32 = arith.constant 0 : i32
    %c0_i32_0 = arith.constant 0 : i32
    %c0_i32_1 = arith.constant 0 : i32
    return %c0_i32, %c0_i32_0 : i32, i32
  }
  func.func @transform_10(%arg0: i32) -> (i32, i32) {
    %c0_i32 = arith.constant 0 : i32
    %c0_i32_0 = arith.constant 0 : i32
    return %arg0, %c0_i32 : i32, i32
  }
  func.func @transform_11(%arg0: i32) -> (i32, i32) {
    %c0_i32 = arith.constant 0 : i32
    %c0_i32_0 = arith.constant 0 : i32
    return %arg0, %c0_i32 : i32, i32
  }
}

</mosaic_0001>

<llo_original>
// kernel: forward.1
$region0: #{forward.1}
  #allocation0 [shape = 'u32[]', space=smem, size = 0x4, offset = 0x4, fixed_abs, tag = 'smem constant byte address 0x4 - core index']
  #allocation1 [shape = 'u32[72,128]{1,0:T(1,128)}', space=vmem, size = 0x9000, scoped, tag = 'internal scratch']
  %s0 = inlined_call_operand.vmem [shape: f32[8,128], index: 0, kind: input, shape index: {}]
  %s1 = inlined_call_operand.hbm [shape: f32[128,128], index: 1, kind: input, shape index: {}]
  %s2 = inlined_call_operand.vmem [shape: f32[1,128], index: 2, kind: input, shape index: {}]
  %s3 = inlined_call_operand.hbm [shape: f32[128,128], index: 3, kind: input, shape index: {}]
  %s4 = inlined_call_operand.vmem [shape: f32[1,128], index: 4, kind: input, shape index: {}]
  %s5 = inlined_call_operand.hbm [shape: f32[128,128], index: 5, kind: input, shape index: {}]
  %s6 = inlined_call_operand.vmem [shape: f32[1,128], index: 6, kind: input, shape index: {}]
  %s7 = inlined_call_operand.hbm [shape: f32[128,128], index: 7, kind: input, shape index: {}]
  %s8 = inlined_call_operand.vmem [shape: f32[1,128], index: 8, kind: input, shape index: {}]
  %s9 = inlined_call_operand.vmem [shape: f32[1,128], index: 9, kind: input, shape index: {}]
  %s10 = inlined_call_operand.vmem [shape: f32[8,128], index: 10, kind: output, shape index: {0}]
  %s11 = inlined_call_operand.vmem [shape: f32[8,128], index: 11, kind: output, shape index: {1}]
  %12 = xla_tuple %s10, %s11
  %s13 = sld [smem:[#allocation0]]
  $region74: #{forward.1} parent=0
    _
  %s15 = ssub.s32 1, %s13
  %s16 = scalar_select 0, %s15, %s13
  $region1: #{forward.1} parent=0
    #allocation2 [shape = 'u8[65536]{0}', space=vmem, size = 0x10000, scoped, tag = 'input window, operand 1, single buffered']
    #allocation3 [shape = 's32[1]{0}', space=sflag, size = 0x4, scoped, tag = 'scoped memory for forward.1']
    #allocation4 [shape = 'u8[65536]{0}', space=vmem, size = 0x10000, scoped, tag = 'input window, operand 3, single buffered']
    #allocation5 [shape = 's32[1]{0}', space=sflag, size = 0x4, scoped, tag = 'scoped memory for forward.1']
    #allocation6 [shape = 'u8[65536]{0}', space=vmem, size = 0x10000, scoped, tag = 'input window, operand 5, single buffered']
    #allocation7 [shape = 'u8[65536]{0}', space=vmem, size = 0x10000, scoped, tag = 'input window, operand 7, single buffered']
    #allocation8 [shape = 's32[1]{0}', space=sflag, size = 0x4, scoped, tag = 'scoped memory for forward.1']
    %17 = vsyncpa [#allocation3], 0
    %18 = vsyncpa [#allocation5], 0
    %19 = vsyncpa [#allocation8], 0
    // Predicated region
    $region2: #{forward.1} parent=1 // pred_check
      _
    $region3: #{forward.1} parent=1 // pred_check_branch
      %21 = sbr.rel (0) target = $region5
    $region4: #{forward.1} parent=1 // pred_region
      _
    $region5: #{forward.1} parent=1 // pred_fallthru
      _
    // Predicated region
    $region6: #{forward.1} parent=1 // pred_check
      _
    $region7: #{forward.1} parent=1 // pred_check_branch
      %23 = sbr.rel (0) target = $region9
    $region8: #{forward.1} parent=1 // pred_region
      %25 = vsyncadd [#allocation3], 0
      %s26 = sshll.u32 %s1, 4
      %s27 = int_to_ptr.hbm [resolvable:$true] %s26
      %s28 = sshll.u32 [#allocation2], 4
      %s29 = int_to_ptr.vmem [resolvable:$true] %s28
      %34 = dma.hbm_to_vmem [thread:$0]  %s27, 2048, %s29, [#allocation3], 128, 128, 8
    $region9: #{forward.1} parent=1 // pred_fallthru
      _
    // Predicated region
    $region10: #{forward.1} parent=1 // pred_check
      _
    $region11: #{forward.1} parent=1 // pred_check_branch
      %36 = sbr.rel (0) target = $region13
    $region12: #{forward.1} parent=1 // pred_region
      _
    $region13: #{forward.1} parent=1 // pred_fallthru
      _
    // Predicated region
    $region14: #{forward.1} parent=1 // pred_check
      _
    $region15: #{forward.1} parent=1 // pred_check_branch
      %38 = sbr.rel (0) target = $region17
    $region16: #{forward.1} parent=1 // pred_region
      %40 = vsyncadd [#allocation5], 0
      %s41 = sshll.u32 %s3, 4
      %s42 = int_to_ptr.hbm [resolvable:$true] %s41
      %s43 = sshll.u32 [#allocation4], 4
      %s44 = int_to_ptr.vmem [resolvable:$true] %s43
      %49 = dma.hbm_to_vmem [thread:$0]  %s42, 2048, %s44, [#allocation5], 128, 128, 8
    $region17: #{forward.1} parent=1 // pred_fallthru
      _
    // Predicated region
    $region18: #{forward.1} parent=1 // pred_check
      _
    $region19: #{forward.1} parent=1 // pred_check_branch
      %51 = sbr.rel (0) target = $region21
    $region20: #{forward.1} parent=1 // pred_region
      _
    $region21: #{forward.1} parent=1 // pred_fallthru
      _
    // Predicated region
    $region22: #{forward.1} parent=1 // pred_check
      _
    $region23: #{forward.1} parent=1 // pred_check_branch
      %53 = sbr.rel (0) target = $region25
    $region24: #{forward.1} parent=1 // pred_region
      %55 = vsyncadd [#allocation5], 0
      %s56 = sshll.u32 %s5, 4
      %s57 = int_to_ptr.hbm [resolvable:$true] %s56
      %s58 = sshll.u32 [#allocation6], 4
      %s59 = int_to_ptr.vmem [resolvable:$true] %s58
      %64 = dma.hbm_to_vmem [thread:$0]  %s57, 2048, %s59, [#allocation5], 128, 128, 8
    $region25: #{forward.1} parent=1 // pred_fallthru
      _
    // Predicated region
    $region26: #{forward.1} parent=1 // pred_check
      _
    $region27: #{forward.1} parent=1 // pred_check_branch
      %66 = sbr.rel (0) target = $region29
    $region28: #{forward.1} parent=1 // pred_region
      _
    $region29: #{forward.1} parent=1 // pred_fallthru
      _
    // Predicated region
    $region30: #{forward.1} parent=1 // pred_check
      _
    $region31: #{forward.1} parent=1 // pred_check_branch
      %68 = sbr.rel (0) target = $region33
    $region32: #{forward.1} parent=1 // pred_region
      %70 = vsyncadd [#allocation8], 0
      %s71 = sshll.u32 %s7, 4
      %s72 = int_to_ptr.hbm [resolvable:$true] %s71
      %s73 = sshll.u32 [#allocation7], 4
      %s74 = int_to_ptr.vmem [resolvable:$true] %s73
      %79 = dma.hbm_to_vmem [thread:$0]  %s72, 2048, %s74, [#allocation8], 128, 128, 8
    $region33: #{forward.1} parent=1 // pred_fallthru
      _
    // Predicated region
    $region34: #{forward.1} parent=1 // pred_check
      _
    $region35: #{forward.1} parent=1 // pred_check_branch
      %81 = sbr.rel (0) target = $region37
    $region36: #{forward.1} parent=1 // pred_region
      _
    $region37: #{forward.1} parent=1 // pred_fallthru
      _
    // Predicated region
    $region38: #{forward.1} parent=1 // pred_check
      _
    $region39: #{forward.1} parent=1 // pred_check_branch
      %83 = sbr.rel (0) target = $region41
    $region40: #{forward.1} parent=1 // pred_region
      _
    $region41: #{forward.1} parent=1 // pred_fallthru
      _
    // Predicated region
    $region42: #{forward.1} parent=1 // pred_check
      _
    $region43: #{forward.1} parent=1 // pred_check_branch
      %85 = sbr.rel (0) target = $region45
    $region44: #{forward.1} parent=1 // pred_region
      %87 = dma.done [#allocation3], 2048
    $region45: #{forward.1} parent=1 // pred_fallthru
      _
    // Predicated region
    $region46: #{forward.1} parent=1 // pred_check
      _
    $region47: #{forward.1} parent=1 // pred_check_branch
      %89 = sbr.rel (0) target = $region49
    $region48: #{forward.1} parent=1 // pred_region
      %91 = dma.done [#allocation5], 2048
    $region49: #{forward.1} parent=1 // pred_fallthru
      _
    // Predicated region
    $region50: #{forward.1} parent=1 // pred_check
      _
    $region51: #{forward.1} parent=1 // pred_check_branch
      %93 = sbr.rel (0) target = $region53
    $region52: #{forward.1} parent=1 // pred_region
      %95 = dma.done [#allocation5], 2048
    $region53: #{forward.1} parent=1 // pred_fallthru
      _
    // Predicated region
    $region54: #{forward.1} parent=1 // pred_check
      _
    $region55: #{forward.1} parent=1 // pred_check_branch
      %97 = sbr.rel (0) target = $region57
    $region56: #{forward.1} parent=1 // pred_region
      %99 = dma.done [#allocation8], 2048
    $region57: #{forward.1} parent=1 // pred_fallthru
      _
    %v100 = vld [vmem:[%s0] sm:$0xff]
    %v101 = vld [vmem:[#allocation2] sm:$0xff]
    %v102 = vld [vmem:[#allocation2 + $0x8] sm:$0xff]
    %v103 = vld [vmem:[#allocation2 + $0x10] sm:$0xff]
    %v104 = vld [vmem:[#allocation2 + $0x18] sm:$0xff]
    %v105 = vld [vmem:[#allocation2 + $0x20] sm:$0xff]
    %v106 = vld [vmem:[#allocation2 + $0x28] sm:$0xff]
    %v107 = vld [vmem:[#allocation2 + $0x30] sm:$0xff]
    %v108 = vld [vmem:[#allocation2 + $0x38] sm:$0xff]
    %v109 = vld [vmem:[#allocation2 + $0x40] sm:$0xff]
    %v110 = vld [vmem:[#allocation2 + $0x48] sm:$0xff]
    %v111 = vld [vmem:[#allocation2 + $0x50] sm:$0xff]
    %v112 = vld [vmem:[#allocation2 + $0x58] sm:$0xff]
    %v113 = vld [vmem:[#allocation2 + $0x60] sm:$0xff]
    %v114 = vld [vmem:[#allocation2 + $0x68] sm:$0xff]
    %v115 = vld [vmem:[#allocation2 + $0x70] sm:$0xff]
    %v116 = vld [vmem:[#allocation2 + $0x78] sm:$0xff]
    %v117 = vld [vmem:[%s2] sm:$0x1]
    %v119 = vperm.slane %v117, 0
    %121 = vmatpush.msra.mxu0 %v116
    %122 = vmatpush.msra.mxu0 %v115
    %123 = vmatpush.msra.mxu0 %v114
    %124 = vmatpush.msra.mxu0 %v113
    %125 = vmatpush.msra.mxu0 %v112
    %126 = vmatpush.msra.mxu0 %v111
    %127 = vmatpush.msra.mxu0 %v110
    %128 = vmatpush.msra.mxu0 %v109
    %129 = vmatpush.msra.mxu0 %v108
    %130 = vmatpush.msra.mxu0 %v107
    %131 = vmatpush.msra.mxu0 %v106
    %132 = vmatpush.msra.mxu0 %v105
    %133 = vmatpush.msra.mxu0 %v104
    %134 = vmatpush.msra.mxu0 %v103
    %135 = vmatpush.msra.mxu0 %v102
    %136 = vmatpush.msra.mxu0 %v101
    %137 = vmatmul.f32.gmra.mxu0 %v100
    %v138 = vpop.f32.mrf.mxu0
    %v139 = vadd.f32 %v119, %v138
    %140 = vdwg.mxu0
    %v141 = vmul.f32 %v139, 0.2
    %v142 = vmax.f32 %v139, %v141
    %v143 = vld [vmem:[#allocation4] sm:$0xff]
    %v144 = vld [vmem:[#allocation4 + $0x8] sm:$0xff]
    %v145 = vld [vmem:[#allocation4 + $0x10] sm:$0xff]
    %v146 = vld [vmem:[#allocation4 + $0x18] sm:$0xff]
    %v147 = vld [vmem:[#allocation4 + $0x20] sm:$0xff]
    %v148 = vld [vmem:[#allocation4 + $0x28] sm:$0xff]
    %v149 = vld [vmem:[#allocation4 + $0x30] sm:$0xff]
    %v150 = vld [vmem:[#allocation4 + $0x38] sm:$0xff]
    %v151 = vld [vmem:[#allocation4 + $0x40] sm:$0xff]
    %v152 = vld [vmem:[#allocation4 + $0x48] sm:$0xff]
    %v153 = vld [vmem:[#allocation4 + $0x50] sm:$0xff]
    %v154 = vld [vmem:[#allocation4 + $0x58] sm:$0xff]
    %v155 = vld [vmem:[#allocation4 + $0x60] sm:$0xff]
    %v156 = vld [vmem:[#allocation4 + $0x68] sm:$0xff]
    %v157 = vld [vmem:[#allocation4 + $0x70] sm:$0xff]
    %v158 = vld [vmem:[#allocation4 + $0x78] sm:$0xff]
    %v159 = vld [vmem:[%s4] sm:$0x1]
    %v161 = vperm.slane %v159, 0
    %163 = vmatpush.msra.mxu0 %v158
    %164 = vmatpush.msra.mxu0 %v157
    %165 = vmatpush.msra.mxu0 %v156
    %166 = vmatpush.msra.mxu0 %v155
    %167 = vmatpush.msra.mxu0 %v154
    %168 = vmatpush.msra.mxu0 %v153
    %169 = vmatpush.msra.mxu0 %v152
    %170 = vmatpush.msra.mxu0 %v151
    %171 = vmatpush.msra.mxu0 %v150
    %172 = vmatpush.msra.mxu0 %v149
    %173 = vmatpush.msra.mxu0 %v148
    %174 = vmatpush.msra.mxu0 %v147
    %175 = vmatpush.msra.mxu0 %v146
    %176 = vmatpush.msra.mxu0 %v145
    %177 = vmatpush.msra.mxu0 %v144
    %178 = vmatpush.msra.mxu0 %v143
    %179 = vmatmul.f32.gmra.mxu0 %v142
    %v180 = vpop.f32.mrf.mxu0
    %v181 = vadd.f32 %v161, %v180
    %182 = vdwg.mxu0
    %v183 = vmul.f32 %v181, 0.2
    %v184 = vmax.f32 %v181, %v183
    %v185 = vld [vmem:[#allocation6] sm:$0xff]
    %v186 = vld [vmem:[#allocation6 + $0x8] sm:$0xff]
    %v187 = vld [vmem:[#allocation6 + $0x10] sm:$0xff]
    %v188 = vld [vmem:[#allocation6 + $0x18] sm:$0xff]
    %v189 = vld [vmem:[#allocation6 + $0x20] sm:$0xff]
    %v190 = vld [vmem:[#allocation6 + $0x28] sm:$0xff]
    %v191 = vld [vmem:[#allocation6 + $0x30] sm:$0xff]
    %v192 = vld [vmem:[#allocation6 + $0x38] sm:$0xff]
    %v193 = vld [vmem:[#allocation6 + $0x40] sm:$0xff]
    %v194 = vld [vmem:[#allocation6 + $0x48] sm:$0xff]
    %v195 = vld [vmem:[#allocation6 + $0x50] sm:$0xff]
    %v196 = vld [vmem:[#allocation6 + $0x58] sm:$0xff]
    %v197 = vld [vmem:[#allocation6 + $0x60] sm:$0xff]
    %v198 = vld [vmem:[#allocation6 + $0x68] sm:$0xff]
    %v199 = vld [vmem:[#allocation6 + $0x70] sm:$0xff]
    %v200 = vld [vmem:[#allocation6 + $0x78] sm:$0xff]
    %v201 = vld [vmem:[%s6] sm:$0x1]
    %v203 = vperm.slane %v201, 0
    %205 = vmatpush.msra.mxu0 %v200
    %206 = vmatpush.msra.mxu0 %v199
    %207 = vmatpush.msra.mxu0 %v198
    %208 = vmatpush.msra.mxu0 %v197
    %209 = vmatpush.msra.mxu0 %v196
    %210 = vmatpush.msra.mxu0 %v195
    %211 = vmatpush.msra.mxu0 %v194
    %212 = vmatpush.msra.mxu0 %v193
    %213 = vmatpush.msra.mxu0 %v192
    %214 = vmatpush.msra.mxu0 %v191
    %215 = vmatpush.msra.mxu0 %v190
    %216 = vmatpush.msra.mxu0 %v189
    %217 = vmatpush.msra.mxu0 %v188
    %218 = vmatpush.msra.mxu0 %v187
    %219 = vmatpush.msra.mxu0 %v186
    %220 = vmatpush.msra.mxu0 %v185
    %221 = vmatmul.f32.gmra.mxu0 %v184
    %v222 = vpop.f32.mrf.mxu0
    %v223 = vadd.f32 %v203, %v222
    %224 = vdwg.mxu0
    %225 = vst [vmem:[%s10] sm:$0xff] %v223
    %v226 = vmul.f32 %v223, %v223
    %v227 = vld [vmem:[#allocation7] sm:$0xff]
    %v228 = vld [vmem:[#allocation7 + $0x8] sm:$0xff]
    %v229 = vld [vmem:[#allocation7 + $0x10] sm:$0xff]
    %v230 = vld [vmem:[#allocation7 + $0x18] sm:$0xff]
    %v231 = vld [vmem:[#allocation7 + $0x20] sm:$0xff]
    %v232 = vld [vmem:[#allocation7 + $0x28] sm:$0xff]
    %v233 = vld [vmem:[#allocation7 + $0x30] sm:$0xff]
    %v234 = vld [vmem:[#allocation7 + $0x38] sm:$0xff]
    %v235 = vld [vmem:[#allocation7 + $0x40] sm:$0xff]
    %v236 = vld [vmem:[#allocation7 + $0x48] sm:$0xff]
    %v237 = vld [vmem:[#allocation7 + $0x50] sm:$0xff]
    %v238 = vld [vmem:[#allocation7 + $0x58] sm:$0xff]
    %v239 = vld [vmem:[#allocation7 + $0x60] sm:$0xff]
    %v240 = vld [vmem:[#allocation7 + $0x68] sm:$0xff]
    %v241 = vld [vmem:[#allocation7 + $0x70] sm:$0xff]
    %v242 = vld [vmem:[#allocation7 + $0x78] sm:$0xff]
    %243 = vmatpush.msra.mxu0 %v242
    %244 = vmatpush.msra.mxu0 %v241
    %245 = vmatpush.msra.mxu0 %v240
    %246 = vmatpush.msra.mxu0 %v239
    %247 = vmatpush.msra.mxu0 %v238
    %248 = vmatpush.msra.mxu0 %v237
    %249 = vmatpush.msra.mxu0 %v236
    %250 = vmatpush.msra.mxu0 %v235
    %251 = vmatpush.msra.mxu0 %v234
    %252 = vmatpush.msra.mxu0 %v233
    %253 = vmatpush.msra.mxu0 %v232
    %254 = vmatpush.msra.mxu0 %v231
    %255 = vmatpush.msra.mxu0 %v230
    %256 = vmatpush.msra.mxu0 %v229
    %257 = vmatpush.msra.mxu0 %v228
    %258 = vmatpush.msra.mxu0 %v227
    %259 = vmatmul.f32.gmra.mxu0 %v226
    %v260 = vpop.f32.mrf.mxu0
    %v261 = vadd.f32 0.0, %v260
    %262 = vdwg.mxu0
    %vm263 = vcmp.gt.f32.partialorder %v261, 0.0
    %v264 = vrsqrt.pop %v261
    %v265 = vmul.f32 %v264, %v261
    %v266 = vmul.f32 %v265, %v264
    %v267 = vmul.f32 0.5, %v266
    %v268 = vsub.f32 1.5, %v267
    %v269 = vmul.f32 %v264, %v268
    %vm270 = vweird.f32 %v261
    %vm271 = vweird.f32 %v264
    %vm272 = vmor %vm270, %vm271
    %v273 = vsel %vm272, %v264, %v269
    %v274 = vsel %vm263, %v273, 0.0
    %v275 = vmul.f32 %v223, %v274
    %v276 = vld [vmem:[%s8] sm:$0x1]
    %v278 = vperm.slane %v276, 0
    %v280 = vsub.f32 %v275, %v278
    %v281 = vld [vmem:[%s9] sm:$0x1]
    %v283 = vperm.slane %v281, 0
    %v285 = vmul.f32 %v280, %v283
    %286 = vst [vmem:[%s11] sm:$0xff] %v285
    // Predicated region
    $region58: #{forward.1} parent=1 // pred_check
      _
    $region59: #{forward.1} parent=1 // pred_check_branch
      %288 = sbr.rel (0) target = $region61
    $region60: #{forward.1} parent=1 // pred_region
      _
    $region61: #{forward.1} parent=1 // pred_fallthru
      _
    // Predicated region
    $region62: #{forward.1} parent=1 // pred_check
      _
    $region63: #{forward.1} parent=1 // pred_check_branch
      %290 = sbr.rel (0) target = $region65
    $region64: #{forward.1} parent=1 // pred_region
      _
    $region65: #{forward.1} parent=1 // pred_fallthru
      _
    // Predicated region
    $region66: #{forward.1} parent=1 // pred_check
      _
    $region67: #{forward.1} parent=1 // pred_check_branch
      %292 = sbr.rel (0) target = $region69
    $region68: #{forward.1} parent=1 // pred_region
      _
    $region69: #{forward.1} parent=1 // pred_fallthru
      _
    // Predicated region
    $region70: #{forward.1} parent=1 // pred_check
      _
    $region71: #{forward.1} parent=1 // pred_check_branch
      %294 = sbr.rel (0) target = $region73
    $region72: #{forward.1} parent=1 // pred_region
      _
    $region73: #{forward.1} parent=1 // pred_fallthru
      _
    %295 = vsyncpa [#allocation3], 1
    %296 = vsyncpa [#allocation5], 1
    %297 = vsyncpa [#allocation8], 1

</llo_original>
